<compile_context>
chip_gen: v7x
topology: tpu7x:2x2x1
jax: 0.10.0
libtpu: 0.0.40
codegen_flags: <defaults>
</compile_context>

<pallas_src>
import functools

import jax
import jax.numpy as jnp
import numpy as np
from jax.experimental import pallas as pl
from jax.experimental.pallas import tpu as pltpu

EPS = 1e-5  # torch.nn.BatchNorm2d default


def basic_block_kernel(x_ref, w1_ref, w2_ref, g1_ref, b1_ref, g2_ref, b2_ref,
                       out_ref, *, c_dim, w_dim, h_dim):
    """Whole BasicBlock forward, everything resident in VMEM.

    x_ref   : (M, L)  f32  lane-dense input, M = N*H, L = W*C
    w*_ref  : (3L, L) bf16 banded conv weights, dy-major (rows = [up|src|dn])
    g*/b*   : (1, L)  f32  BN gamma / beta pre-expanded over the W*C lane axis
    out_ref : (M, L)  f32
    """
    m, l = x_ref.shape
    inv_count = 1.0 / (m * w_dim)          # elements per channel = N*H*W

    x = x_ref[...]                          # f32

    # Per-image row index for the H-direction (padding=1) border masks.  The
    # same masks also kill the roll wrap-around across batch boundaries.
    hh = jax.lax.broadcasted_iota(jnp.int32, (m, l), 0) % h_dim
    top = hh == 0
    bot = hh == h_dim - 1

    def conv3x3(src_f32, w_ref):
        # H halo: sublane rolls (XLU) + masks (VPU).  dx taps + channel
        # contraction + W-direction zero padding are folded into the banded
        # (3L, L) weight -> single lane-dense MXU contraction (K = 3L) with
        # bf16 operands and f32 accumulation.
        up = jnp.where(top, 0.0, pltpu.roll(src_f32, 1, axis=0))       # row h-1
        dn = jnp.where(bot, 0.0, pltpu.roll(src_f32, m - 1, axis=0))   # row h+1
        opnd = jnp.concatenate([up, src_f32, dn], axis=1).astype(jnp.bfloat16)
        return jnp.dot(opnd, w_ref[...], preferred_element_type=jnp.float32)

    def fold_w(strip):
        # Lane j accumulates all lanes congruent to j (mod C): per-channel sum
        # broadcast over the W lane-groups, via a log-tree of XLU lane rolls on
        # a 1-row strip (rows were already reduced -> ~M/8x less XLU work).
        shift = l // 2
        while shift >= c_dim:
            strip = strip + pltpu.roll(strip, shift, axis=1)
            shift //= 2
        return strip

    def batch_norm(a, g_lane, b_lane):
        # Training-mode BatchNorm2d: biased batch statistics over (N, H, W),
        # centered two-pass variance, all in f32.
        mean = fold_w(jnp.sum(a, axis=0, keepdims=True)) * inv_count     # (1, L)
        centered = a - mean
        var = fold_w(jnp.sum(centered * centered, axis=0,
                             keepdims=True)) * inv_count                 # (1, L)
        scale = g_lane * jax.lax.rsqrt(var + EPS)
        return centered * scale + b_lane

    h1 = jnp.maximum(batch_norm(conv3x3(x, w1_ref), g1_ref[...], b1_ref[...]),
                     0.0)
    y = batch_norm(conv3x3(h1, w2_ref), g2_ref[...], b2_ref[...])
    out_ref[...] = jnp.maximum(y + x, 0.0)


def _banded_conv_weights(wgt, w):
    """(3, 3, Cin, Cout) HWIO -> (3*W*Cin, W*Cout) bf16, dy-major.

    wb[dy*W*Cin + wi*Cin + ci, wo*Cout + co] = wgt[dy, wi-wo+1, ci, co]
    (0 when |wi - wo| > 1), i.e. the dx taps, the channel contraction and the
    W-direction zero padding all live in one block-banded matrix.
    """
    kh, kw, cin, cout = wgt.shape
    wi = jnp.arange(w)[None, :, None]
    wo = jnp.arange(w)[None, None, :]
    dx = jnp.arange(kw)[:, None, None]
    sel = (wi == wo + dx - 1).astype(jnp.float32)                    # (kw, W, W)
    wb = jnp.einsum('xio,yxcd->yicod', sel, wgt.astype(jnp.float32))
    return wb.reshape(kh * w * cin, w * cout).astype(jnp.bfloat16)


@jax.jit
def basic_block_forward_nhwc(x_nhwc, w1, g1, b1, w2, g2, b2):
    """Kernel-facing wrapper (NHWC in / NHWC out, lane-dense internally)."""
    x = x_nhwc.astype(jnp.float32)
    n, h, w, c = x.shape
    assert w1.shape == (3, 3, c, c) and w2.shape == (3, 3, c, c), \
        "residual add requires inplanes == planes (stride=1)"
    assert (w & (w - 1)) == 0 and (c & (c - 1)) == 0, \
        "W and C must be powers of two for the lane fold"
    # TODO(synk): for best lane utilization W*C should be a multiple of 128
    # (true for the test shape: 16 * 8 = 128).

    l = w * c
    m = n * h
    x2 = x.reshape(m, l)                                   # lane-dense (M, L)

    w1b = _banded_conv_weights(w1, w)                      # (3L, L) bf16
    w2b = _banded_conv_weights(w2, w)

    # Pre-expand BN affine params over the W*C lane axis (broadcast hoisted).
    def lane_expand(v):
        return jnp.tile(v.reshape(1, c).astype(jnp.float32), (1, w))  # (1, L)

    out2 = pl.pallas_call(
        functools.partial(basic_block_kernel, c_dim=c, w_dim=w, h_dim=h),
        out_shape=jax.ShapeDtypeStruct((m, l), jnp.float32),
        in_specs=[pl.BlockSpec(memory_space=pltpu.MemorySpace.VMEM)] * 7,
        out_specs=pl.BlockSpec(memory_space=pltpu.MemorySpace.VMEM),
    )(x2, w1b, w2b, lane_expand(g1), lane_expand(b1),
      lane_expand(g2), lane_expand(b2))

    return out2.reshape(n, h, w, c)


def basic_block_forward(x_nchw, w1, g1, b1, w2, g2, b2):
    """NCHW convenience entry for PyTorch interface parity.

    TODO(synk): in a real pipeline keep activations NHWC end-to-end; each of
    these transposes is a full HBM round trip of the activation.
    """
    x_nhwc = jnp.transpose(x_nchw, (0, 2, 3, 1))
    out_nhwc = basic_block_forward_nhwc(x_nhwc, w1, g1, b1, w2, g2, b2)
    return jnp.transpose(out_nhwc, (0, 3, 1, 2))


def _reference_nhwc(x_nhwc, w1, g1, b1, w2, g2, b2, matmul_dtype):
    """Plain-JAX reference. matmul_dtype=bf16 mirrors the kernel's intentional
    operand quantization (f32 accumulation either way)."""
    x = x_nhwc.astype(jnp.float32)

    def conv(hh, wgt):
        return jax.lax.conv_general_dilated(
            hh.astype(matmul_dtype), wgt.astype(matmul_dtype),
            window_strides=(1, 1), padding="SAME",
            dimension_numbers=("NHWC", "HWIO", "NHWC"),
            preferred_element_type=jnp.float32)

    def bn(hh, g, b):
        mean = jnp.mean(hh, axis=(0, 1, 2), keepdims=True)
        var = jnp.mean((hh - mean) ** 2, axis=(0, 1, 2), keepdims=True)
        return (hh - mean) * jax.lax.rsqrt(var + EPS) * g.reshape(1, 1, 1, -1) \
               + b.reshape(1, 1, 1, -1)

    h1 = jnp.maximum(bn(conv(x, w1), g1, b1), 0.0)
    return jnp.maximum(bn(conv(h1, w2), g2, b2) + x, 0.0)


if __name__ == "__main__":
    # Small shapes: batch=2, inplanes=planes=8, spatial=16x16, stride=1
    # (W*C = 128 -> exactly lane-dense).
    N, C, H, W = 2, 8, 16, 16

    key = jax.random.PRNGKey(0)
    kx, k1, k2 = jax.random.split(key, 3)

    x = jax.random.normal(kx, (N, C, H, W), dtype=jnp.float32)   # NCHW (torch)

    # conv3x3 weights, HWIO layout, kaiming-like scale (bias=False).
    fan_in = C * 3 * 3
    w1 = jax.random.normal(k1, (3, 3, C, C), jnp.float32) * np.sqrt(2.0 / fan_in)
    w2 = jax.random.normal(k2, (3, 3, C, C), jnp.float32) * np.sqrt(2.0 / fan_in)

    # BatchNorm2d default affine params: gamma=1, beta=0.
    g1 = jnp.ones((C,), jnp.float32)
    b1 = jnp.zeros((C,), jnp.float32)
    g2 = jnp.ones((C,), jnp.float32)
    b2 = jnp.zeros((C,), jnp.float32)

    out = jax.block_until_ready(basic_block_forward(x, w1, g1, b1, w2, g2, b2))
    assert out.shape == (N, C, H, W)

    x_nhwc = jnp.transpose(x, (0, 2, 3, 1))

    # Tight check against a reference that uses the same bf16 matmul-operand
    # quantization (isolates kernel bugs from the intentional precision trade).
    ref_bf16 = jnp.transpose(
        _reference_nhwc(x_nhwc, w1, g1, b1, w2, g2, b2, jnp.bfloat16),
        (0, 3, 1, 2))
    np.testing.assert_allclose(np.asarray(out), np.asarray(ref_bf16),
                               atol=2e-3, rtol=2e-3)

    # Loose check against the full-f32 reference (PyTorch semantics).
    ref_f32 = jnp.transpose(
        _reference_nhwc(x_nhwc, w1, g1, b1, w2, g2, b2, jnp.float32),
        (0, 3, 1, 2))
    np.testing.assert_allclose(np.asarray(out), np.asarray(ref_f32),
                               atol=3e-2, rtol=3e-2)

    print("KERNEL_OK")
</pallas_src>

<mosaic_0001>
module attributes {stable_mosaic.version = 11 : i64} {
  func.func @basic_block_kernel(%arg0: memref<32x128xf32, #tpu.memory_space<vmem>>, %arg1: memref<384x128xbf16, #tpu.memory_space<vmem>>, %arg2: memref<384x128xbf16, #tpu.memory_space<vmem>>, %arg3: memref<1x128xf32, #tpu.memory_space<vmem>>, %arg4: memref<1x128xf32, #tpu.memory_space<vmem>>, %arg5: memref<1x128xf32, #tpu.memory_space<vmem>>, %arg6: memref<1x128xf32, #tpu.memory_space<vmem>>, %arg7: memref<32x128xf32, #tpu.memory_space<vmem>>) attributes {dimension_semantics = [], scalar_prefetch = 0 : i64, scratch_operands = 0 : i64, tpu.core_type = #tpu.core_type<tc>} {
    %c0 = arith.constant 0 : index
    %c0_0 = arith.constant 0 : index
    %0 = vector.load %arg0[%c0, %c0_0] : memref<32x128xf32, #tpu.memory_space<vmem>>, vector<32x128xf32>
    %1 = tpu.iota {dimensions = array<i32: 0>} : vector<32x128xi32>
    %c16_i32 = arith.constant 16 : i32
    %c0_i32 = arith.constant 0 : i32
    %2 = arith.cmpi eq, %c16_i32, %c0_i32 : i32
    %c1_i32 = arith.constant 1 : i32
    %3 = arith.select %2, %c1_i32, %c16_i32 : i32
    %4 = vector.broadcast %3 : i32 to vector<32x128xi32>
    %5 = arith.remsi %1, %4 : vector<32x128xi32>
    %c0_i32_1 = arith.constant 0 : i32
    %6 = vector.broadcast %c0_i32_1 : i32 to vector<32x128xi32>
    %7 = arith.cmpi ne, %5, %6 : vector<32x128xi32>
    %c0_i32_2 = arith.constant 0 : i32
    %8 = vector.broadcast %c0_i32_2 : i32 to vector<32x128xi32>
    %9 = arith.cmpi slt, %5, %8 : vector<32x128xi32>
    %c0_i32_3 = arith.constant 0 : i32
    %10 = arith.cmpi slt, %3, %c0_i32_3 : i32
    %11 = vector.broadcast %10 : i1 to vector<32x128xi1>
    %12 = vector.broadcast %11 : vector<32x128xi1> to vector<32x128xi1>
    %13 = arith.xori %9, %12 : vector<32x128xi1>
    %14 = arith.andi %13, %7 : vector<32x128xi1>
    %15 = vector.broadcast %3 : i32 to vector<32x128xi32>
    %16 = arith.addi %5, %15 : vector<32x128xi32>
    %17 = arith.select %14, %16, %5 : vector<32x128xi1>, vector<32x128xi32>
    %c0_i32_4 = arith.constant 0 : i32
    %18 = vector.broadcast %c0_i32_4 : i32 to vector<32x128xi32>
    %19 = arith.cmpi eq, %17, %18 : vector<32x128xi32>
    %c15_i32 = arith.constant 15 : i32
    %20 = vector.broadcast %c15_i32 : i32 to vector<32x128xi32>
    %21 = arith.cmpi eq, %17, %20 : vector<32x128xi32>
    %c1_i32_5 = arith.constant 1 : i32
    %22 = tpu.dynamic_rotate %0 by %c1_i32_5 dim 0 : vector<32x128xf32>, i32 -> vector<32x128xf32>
    %cst = arith.constant 0.000000e+00 : f32
    %23 = vector.broadcast %cst : f32 to vector<32x128xf32>
    %24 = arith.select %19, %23, %22 : vector<32x128xi1>, vector<32x128xf32>
    %c31_i32 = arith.constant 31 : i32
    %25 = tpu.dynamic_rotate %0 by %c31_i32 dim 0 : vector<32x128xf32>, i32 -> vector<32x128xf32>
    %cst_6 = arith.constant 0.000000e+00 : f32
    %26 = vector.broadcast %cst_6 : f32 to vector<32x128xf32>
    %27 = arith.select %21, %26, %25 : vector<32x128xi1>, vector<32x128xf32>
    %28 = tpu.concatenate %24, %0, %27 in 1 : vector<32x128xf32>, vector<32x128xf32>, vector<32x128xf32> -> vector<32x384xf32>
    %29 = arith.truncf %28 : vector<32x384xf32> to vector<32x384xbf16>
    %c0_7 = arith.constant 0 : index
    %c0_8 = arith.constant 0 : index
    %30 = vector.load %arg1[%c0_7, %c0_8] : memref<384x128xbf16, #tpu.memory_space<vmem>>, vector<384x128xbf16>
    %cst_9 = arith.constant dense<0.000000e+00> : vector<32x128xf32>
    %31 = tpu.matmul %29, %30, %cst_9 {dimension_numbers = #tpu.dot_dimension_numbers<[1], [0], [0], [1], [0, 0, 1, 1], [], []>} : vector<32x384xbf16>, vector<384x128xbf16>, vector<32x128xf32> -> vector<32x128xf32>
    %c0_10 = arith.constant 0 : index
    %c0_11 = arith.constant 0 : index
    %32 = vector.load %arg3[%c0_10, %c0_11] : memref<1x128xf32, #tpu.memory_space<vmem>>, vector<1x128xf32>
    %c0_12 = arith.constant 0 : index
    %c0_13 = arith.constant 0 : index
    %33 = vector.load %arg4[%c0_12, %c0_13] : memref<1x128xf32, #tpu.memory_space<vmem>>, vector<1x128xf32>
    %cst_14 = arith.constant dense<0.000000e+00> : vector<128xf32>
    %34 = vector.multi_reduction <add>, %31, %cst_14 [0] : vector<32x128xf32> to vector<128xf32>
    %35 = vector.shape_cast %34 : vector<128xf32> to vector<1x128xf32>
    %c64_i32 = arith.constant 64 : i32
    %36 = tpu.dynamic_rotate %35 by %c64_i32 dim 1 : vector<1x128xf32>, i32 -> vector<1x128xf32>
    %37 = arith.addf %35, %36 : vector<1x128xf32>
    %c32_i32 = arith.constant 32 : i32
    %38 = tpu.dynamic_rotate %37 by %c32_i32 dim 1 : vector<1x128xf32>, i32 -> vector<1x128xf32>
    %39 = arith.addf %37, %38 : vector<1x128xf32>
    %c16_i32_15 = arith.constant 16 : i32
    %40 = tpu.dynamic_rotate %39 by %c16_i32_15 dim 1 : vector<1x128xf32>, i32 -> vector<1x128xf32>
    %41 = arith.addf %39, %40 : vector<1x128xf32>
    %c8_i32 = arith.constant 8 : i32
    %42 = tpu.dynamic_rotate %41 by %c8_i32 dim 1 : vector<1x128xf32>, i32 -> vector<1x128xf32>
    %43 = arith.addf %41, %42 : vector<1x128xf32>
    %cst_16 = arith.constant 0.001953125 : f32
    %44 = vector.broadcast %cst_16 : f32 to vector<1x128xf32>
    %45 = arith.mulf %43, %44 : vector<1x128xf32>
    %46 = vector.broadcast %45 : vector<1x128xf32> to vector<32x128xf32>
    %47 = arith.subf %31, %46 : vector<32x128xf32>
    %48 = arith.mulf %47, %47 : vector<32x128xf32>
    %cst_17 = arith.constant dense<0.000000e+00> : vector<128xf32>
    %49 = vector.multi_reduction <add>, %48, %cst_17 [0] : vector<32x128xf32> to vector<128xf32>
    %50 = vector.shape_cast %49 : vector<128xf32> to vector<1x128xf32>
    %c64_i32_18 = arith.constant 64 : i32
    %51 = tpu.dynamic_rotate %50 by %c64_i32_18 dim 1 : vector<1x128xf32>, i32 -> vector<1x128xf32>
    %52 = arith.addf %50, %51 : vector<1x128xf32>
    %c32_i32_19 = arith.constant 32 : i32
    %53 = tpu.dynamic_rotate %52 by %c32_i32_19 dim 1 : vector<1x128xf32>, i32 -> vector<1x128xf32>
    %54 = arith.addf %52, %53 : vector<1x128xf32>
    %c16_i32_20 = arith.constant 16 : i32
    %55 = tpu.dynamic_rotate %54 by %c16_i32_20 dim 1 : vector<1x128xf32>, i32 -> vector<1x128xf32>
    %56 = arith.addf %54, %55 : vector<1x128xf32>
    %c8_i32_21 = arith.constant 8 : i32
    %57 = tpu.dynamic_rotate %56 by %c8_i32_21 dim 1 : vector<1x128xf32>, i32 -> vector<1x128xf32>
    %58 = arith.addf %56, %57 : vector<1x128xf32>
    %cst_22 = arith.constant 0.001953125 : f32
    %59 = vector.broadcast %cst_22 : f32 to vector<1x128xf32>
    %60 = arith.mulf %58, %59 : vector<1x128xf32>
    %cst_23 = arith.constant 9.99999974E-6 : f32
    %61 = vector.broadcast %cst_23 : f32 to vector<1x128xf32>
    %62 = arith.addf %60, %61 : vector<1x128xf32>
    %63 = math.rsqrt %62 : vector<1x128xf32>
    %64 = arith.mulf %32, %63 : vector<1x128xf32>
    %65 = vector.broadcast %64 : vector<1x128xf32> to vector<32x128xf32>
    %66 = arith.mulf %47, %65 : vector<32x128xf32>
    %67 = vector.broadcast %33 : vector<1x128xf32> to vector<32x128xf32>
    %68 = arith.addf %66, %67 : vector<32x128xf32>
    %cst_24 = arith.constant 0.000000e+00 : f32
    %69 = vector.broadcast %cst_24 : f32 to vector<32x128xf32>
    %70 = arith.maximumf %68, %69 : vector<32x128xf32>
    %c1_i32_25 = arith.constant 1 : i32
    %71 = tpu.dynamic_rotate %70 by %c1_i32_25 dim 0 : vector<32x128xf32>, i32 -> vector<32x128xf32>
    %cst_26 = arith.constant 0.000000e+00 : f32
    %72 = vector.broadcast %cst_26 : f32 to vector<32x128xf32>
    %73 = arith.select %19, %72, %71 : vector<32x128xi1>, vector<32x128xf32>
    %c31_i32_27 = arith.constant 31 : i32
    %74 = tpu.dynamic_rotate %70 by %c31_i32_27 dim 0 : vector<32x128xf32>, i32 -> vector<32x128xf32>
    %cst_28 = arith.constant 0.000000e+00 : f32
    %75 = vector.broadcast %cst_28 : f32 to vector<32x128xf32>
    %76 = arith.select %21, %75, %74 : vector<32x128xi1>, vector<32x128xf32>
    %77 = tpu.concatenate %73, %70, %76 in 1 : vector<32x128xf32>, vector<32x128xf32>, vector<32x128xf32> -> vector<32x384xf32>
    %78 = arith.truncf %77 : vector<32x384xf32> to vector<32x384xbf16>
    %c0_29 = arith.constant 0 : index
    %c0_30 = arith.constant 0 : index
    %79 = vector.load %arg2[%c0_29, %c0_30] : memref<384x128xbf16, #tpu.memory_space<vmem>>, vector<384x128xbf16>
    %cst_31 = arith.constant dense<0.000000e+00> : vector<32x128xf32>
    %80 = tpu.matmul %78, %79, %cst_31 {dimension_numbers = #tpu.dot_dimension_numbers<[1], [0], [0], [1], [0, 0, 1, 1], [], []>} : vector<32x384xbf16>, vector<384x128xbf16>, vector<32x128xf32> -> vector<32x128xf32>
    %c0_32 = arith.constant 0 : index
    %c0_33 = arith.constant 0 : index
    %81 = vector.load %arg5[%c0_32, %c0_33] : memref<1x128xf32, #tpu.memory_space<vmem>>, vector<1x128xf32>
    %c0_34 = arith.constant 0 : index
    %c0_35 = arith.constant 0 : index
    %82 = vector.load %arg6[%c0_34, %c0_35] : memref<1x128xf32, #tpu.memory_space<vmem>>, vector<1x128xf32>
    %cst_36 = arith.constant dense<0.000000e+00> : vector<128xf32>
    %83 = vector.multi_reduction <add>, %80, %cst_36 [0] : vector<32x128xf32> to vector<128xf32>
    %84 = vector.shape_cast %83 : vector<128xf32> to vector<1x128xf32>
    %c64_i32_37 = arith.constant 64 : i32
    %85 = tpu.dynamic_rotate %84 by %c64_i32_37 dim 1 : vector<1x128xf32>, i32 -> vector<1x128xf32>
    %86 = arith.addf %84, %85 : vector<1x128xf32>
    %c32_i32_38 = arith.constant 32 : i32
    %87 = tpu.dynamic_rotate %86 by %c32_i32_38 dim 1 : vector<1x128xf32>, i32 -> vector<1x128xf32>
    %88 = arith.addf %86, %87 : vector<1x128xf32>
    %c16_i32_39 = arith.constant 16 : i32
    %89 = tpu.dynamic_rotate %88 by %c16_i32_39 dim 1 : vector<1x128xf32>, i32 -> vector<1x128xf32>
    %90 = arith.addf %88, %89 : vector<1x128xf32>
    %c8_i32_40 = arith.constant 8 : i32
    %91 = tpu.dynamic_rotate %90 by %c8_i32_40 dim 1 : vector<1x128xf32>, i32 -> vector<1x128xf32>
    %92 = arith.addf %90, %91 : vector<1x128xf32>
    %cst_41 = arith.constant 0.001953125 : f32
    %93 = vector.broadcast %cst_41 : f32 to vector<1x128xf32>
    %94 = arith.mulf %92, %93 : vector<1x128xf32>
    %95 = vector.broadcast %94 : vector<1x128xf32> to vector<32x128xf32>
    %96 = arith.subf %80, %95 : vector<32x128xf32>
    %97 = arith.mulf %96, %96 : vector<32x128xf32>
    %cst_42 = arith.constant dense<0.000000e+00> : vector<128xf32>
    %98 = vector.multi_reduction <add>, %97, %cst_42 [0] : vector<32x128xf32> to vector<128xf32>
    %99 = vector.shape_cast %98 : vector<128xf32> to vector<1x128xf32>
    %c64_i32_43 = arith.constant 64 : i32
    %100 = tpu.dynamic_rotate %99 by %c64_i32_43 dim 1 : vector<1x128xf32>, i32 -> vector<1x128xf32>
    %101 = arith.addf %99, %100 : vector<1x128xf32>
    %c32_i32_44 = arith.constant 32 : i32
    %102 = tpu.dynamic_rotate %101 by %c32_i32_44 dim 1 : vector<1x128xf32>, i32 -> vector<1x128xf32>
    %103 = arith.addf %101, %102 : vector<1x128xf32>
    %c16_i32_45 = arith.constant 16 : i32
    %104 = tpu.dynamic_rotate %103 by %c16_i32_45 dim 1 : vector<1x128xf32>, i32 -> vector<1x128xf32>
    %105 = arith.addf %103, %104 : vector<1x128xf32>
    %c8_i32_46 = arith.constant 8 : i32
    %106 = tpu.dynamic_rotate %105 by %c8_i32_46 dim 1 : vector<1x128xf32>, i32 -> vector<1x128xf32>
    %107 = arith.addf %105, %106 : vector<1x128xf32>
    %cst_47 = arith.constant 0.001953125 : f32
    %108 = vector.broadcast %cst_47 : f32 to vector<1x128xf32>
    %109 = arith.mulf %107, %108 : vector<1x128xf32>
    %cst_48 = arith.constant 9.99999974E-6 : f32
    %110 = vector.broadcast %cst_48 : f32 to vector<1x128xf32>
    %111 = arith.addf %109, %110 : vector<1x128xf32>
    %112 = math.rsqrt %111 : vector<1x128xf32>
    %113 = arith.mulf %81, %112 : vector<1x128xf32>
    %114 = vector.broadcast %113 : vector<1x128xf32> to vector<32x128xf32>
    %115 = arith.mulf %96, %114 : vector<32x128xf32>
    %116 = vector.broadcast %82 : vector<1x128xf32> to vector<32x128xf32>
    %117 = arith.addf %115, %116 : vector<32x128xf32>
    %118 = arith.addf %117, %0 : vector<32x128xf32>
    %cst_49 = arith.constant 0.000000e+00 : f32
    %119 = vector.broadcast %cst_49 : f32 to vector<32x128xf32>
    %120 = arith.maximumf %118, %119 : vector<32x128xf32>
    %c0_50 = arith.constant 0 : index
    %c0_51 = arith.constant 0 : index
    %121 = vector.load %arg7[%c0_50, %c0_51] : memref<32x128xf32, #tpu.memory_space<vmem>>, vector<32x128xf32>
    tpu.vector_store %arg7[%c0_50, %c0_51], %120 {strides = array<i32>} : memref<32x128xf32, #tpu.memory_space<vmem>>, vector<32x128xf32>,
    return
  }
}

</mosaic_0001>

<llo_original>
// kernel: basic_block_forward_nhwc.1
$region0: #{basic_block_forward_nhwc.1}
  #allocation0 [shape = 'u32[]', space=smem, size = 0x4, offset = 0x4, fixed_abs, tag = 'smem constant byte address 0x4 - core index']
  #allocation1 [shape = 'u32[144,128]{1,0:T(1,128)}', space=vmem, size = 0x12000, scoped, tag = 'internal scratch']
  %s0 = inlined_call_operand.vmem [shape: f32[32,128], index: 0, kind: input, shape index: {}]
  %s1 = inlined_call_operand.vmem [shape: bf16[384,128], index: 1, kind: input, shape index: {}]
  %s2 = inlined_call_operand.vmem [shape: bf16[384,128], index: 2, kind: input, shape index: {}]
  %s3 = inlined_call_operand.vmem [shape: f32[1,128], index: 3, kind: input, shape index: {}]
  %s4 = inlined_call_operand.vmem [shape: f32[1,128], index: 4, kind: input, shape index: {}]
  %s5 = inlined_call_operand.vmem [shape: f32[1,128], index: 5, kind: input, shape index: {}]
  %s6 = inlined_call_operand.vmem [shape: f32[1,128], index: 6, kind: input, shape index: {}]
  %s7 = inlined_call_operand.vmem [shape: f32[32,128], index: 7, kind: output, shape index: {}]
  %s8 = sld [smem:[#allocation0]]
  $region38: #{basic_block_forward_nhwc.1} parent=0
    _
  %s10 = ssub.s32 1, %s8
  %s11 = scalar_select 0, %s10, %s8
  // Predicated region
  $region2: #{basic_block_forward_nhwc.1} parent=0 // pred_check
    _
  $region3: #{basic_block_forward_nhwc.1} parent=0 // pred_check_branch
    %13 = sbr.rel (0) target = $region5
  $region4: #{basic_block_forward_nhwc.1} parent=0 // pred_region
    _
  $region5: #{basic_block_forward_nhwc.1} parent=0 // pred_fallthru
    _
  // Predicated region
  $region6: #{basic_block_forward_nhwc.1} parent=0 // pred_check
    _
  $region7: #{basic_block_forward_nhwc.1} parent=0 // pred_check_branch
    %15 = sbr.rel (0) target = $region9
  $region8: #{basic_block_forward_nhwc.1} parent=0 // pred_region
    _
  $region9: #{basic_block_forward_nhwc.1} parent=0 // pred_fallthru
    _
  // Predicated region
  $region10: #{basic_block_forward_nhwc.1} parent=0 // pred_check
    _
  $region11: #{basic_block_forward_nhwc.1} parent=0 // pred_check_branch
    %17 = sbr.rel (0) target = $region13
  $region12: #{basic_block_forward_nhwc.1} parent=0 // pred_region
    _
  $region13: #{basic_block_forward_nhwc.1} parent=0 // pred_fallthru
    _
  // Predicated region
  $region14: #{basic_block_forward_nhwc.1} parent=0 // pred_check
    _
  $region15: #{basic_block_forward_nhwc.1} parent=0 // pred_check_branch
    %19 = sbr.rel (0) target = $region17
  $region16: #{basic_block_forward_nhwc.1} parent=0 // pred_region
    _
  $region17: #{basic_block_forward_nhwc.1} parent=0 // pred_fallthru
    _
  // Predicated region
  $region18: #{basic_block_forward_nhwc.1} parent=0 // pred_check
    _
  $region19: #{basic_block_forward_nhwc.1} parent=0 // pred_check_branch
    %21 = sbr.rel (0) target = $region21
  $region20: #{basic_block_forward_nhwc.1} parent=0 // pred_region
    _
  $region21: #{basic_block_forward_nhwc.1} parent=0 // pred_fallthru
    _
  // Predicated region
  $region22: #{basic_block_forward_nhwc.1} parent=0 // pred_check
    _
  $region23: #{basic_block_forward_nhwc.1} parent=0 // pred_check_branch
    %23 = sbr.rel (0) target = $region25
  $region24: #{basic_block_forward_nhwc.1} parent=0 // pred_region
    _
  $region25: #{basic_block_forward_nhwc.1} parent=0 // pred_fallthru
    _
  // Predicated region
  $region26: #{basic_block_forward_nhwc.1} parent=0 // pred_check
    _
  $region27: #{basic_block_forward_nhwc.1} parent=0 // pred_check_branch
    %25 = sbr.rel (0) target = $region29
  $region28: #{basic_block_forward_nhwc.1} parent=0 // pred_region
    _
  $region29: #{basic_block_forward_nhwc.1} parent=0 // pred_fallthru
    _
  %v27 = vld [vmem:[%s0] sm:$0xff]
  %v28 = vld [vmem:[%s0 + $0x8] sm:$0xff]
  %v29 = vld [vmem:[%s0 + $0x10] sm:$0xff]
  %v30 = vld [vmem:[%s0 + $0x18] sm:$0xff]
  %v31 = vlaneseq
  %v32 = vshrl.u32 %v31, 7
  %v33 = vadd.s32 %v32, 8
  %v34 = vadd.s32 %v32, 16
  %v35 = vadd.s32 %v32, 24
  %vm36 = vcmp.lt.s32.totalorder %v32, 0
  %v37 = vsub.s32 0, %v32
  %v38 = vsel %vm36, %v37, %v32
  %v39 = vshrl.u32 %v38, 4
  %v40 = vand.u32 %v38, 15
  %v41 = vsub.s32 0, %v40
  %v42 = vsel %vm36, %v41, %v40
  %vm43 = vcmp.lt.s32.totalorder %v33, 0
  %v44 = vsub.s32 0, %v33
  %v45 = vsel %vm43, %v44, %v33
  %v46 = vshrl.u32 %v45, 4
  %v47 = vand.u32 %v45, 15
  %v48 = vsub.s32 0, %v47
  %v49 = vsel %vm43, %v48, %v47
  %vm50 = vcmp.lt.s32.totalorder %v34, 0
  %v51 = vsub.s32 0, %v34
  %v52 = vsel %vm50, %v51, %v34
  %v53 = vshrl.u32 %v52, 4
  %v54 = vand.u32 %v52, 15
  %v55 = vsub.s32 0, %v54
  %v56 = vsel %vm50, %v55, %v54
  %vm57 = vcmp.lt.s32.totalorder %v35, 0
  %v58 = vsub.s32 0, %v35
  %v59 = vsel %vm57, %v58, %v35
  %v60 = vshrl.u32 %v59, 4
  %v61 = vand.u32 %v59, 15
  %v62 = vsub.s32 0, %v61
  %v63 = vsel %vm57, %v62, %v61
  %vm64 = vcmp.ne.s32.totalorder %v42, 0
  %vm65 = vcmp.ne.s32.totalorder %v49, 0
  %vm66 = vcmp.ne.s32.totalorder %v56, 0
  %vm67 = vcmp.ne.s32.totalorder %v63, 0
  %vm68 = vcmp.lt.s32.totalorder %v42, 0
  %vm69 = vcmp.lt.s32.totalorder %v49, 0
  %vm70 = vcmp.lt.s32.totalorder %v56, 0
  %vm71 = vcmp.lt.s32.totalorder %v63, 0
  %vm72 = vmand %vm68, %vm64
  %vm73 = vmand %vm69, %vm65
  %vm74 = vmand %vm70, %vm66
  %vm75 = vmand %vm71, %vm67
  %v76 = vadd.s32 %v42, 16
  %v77 = vadd.s32 %v49, 16
  %v78 = vadd.s32 %v56, 16
  %v79 = vadd.s32 %v63, 16
  %v80 = vsel %vm72, %v76, %v42
  %v81 = vsel %vm73, %v77, %v49
  %v82 = vsel %vm74, %v78, %v56
  %v83 = vsel %vm75, %v79, %v63
  %vm84 = vcmp.eq.s32.totalorder %v80, 0
  %vm85 = vcmp.eq.s32.totalorder %v81, 0
  %vm86 = vcmp.eq.s32.totalorder %v82, 0
  %vm87 = vcmp.eq.s32.totalorder %v83, 0
  %vm88 = vcmp.eq.s32.totalorder %v80, 15
  %vm89 = vcmp.eq.s32.totalorder %v81, 15
  %vm90 = vcmp.eq.s32.totalorder %v82, 15
  %vm91 = vcmp.eq.s32.totalorder %v83, 15
  %v92 = vrot.slane %v27, 7
  %v93 = vrot.slane %v28, 7
  %v94 = vrot.slane %v29, 7
  %v95 = vrot.slane %v30, 7
  %vm96 = vcmp.lt.s32.totalorder %v32, 1
  %v97 = vsel %vm96, %v94, %v95
  %v98 = vsel %vm96, %v93, %v94
  %v99 = vsel %vm96, %v92, %v93
  %v100 = vsel %vm96, %v95, %v92
  %v101 = vsel %vm84, 0.0, %v100
  %v102 = vsel %vm85, 0.0, %v99
  %v103 = vsel %vm86, 0.0, %v98
  %v104 = vsel %vm87, 0.0, %v97
  %v105 = vrot.slane %v27, 1
  %v106 = vrot.slane %v28, 1
  %v107 = vrot.slane %v29, 1
  %v108 = vrot.slane %v30, 1
  %vm109 = vcmp.lt.s32.totalorder %v32, 7
  %v110 = vsel %vm109, %v107, %v108
  %v111 = vsel %vm109, %v106, %v107
  %v112 = vsel %vm109, %v105, %v106
  %v113 = vsel %vm109, %v108, %v105
  %v114 = vsel %vm88, 0.0, %v112
  %v115 = vsel %vm89, 0.0, %v111
  %v116 = vsel %vm90, 0.0, %v110
  %v117 = vsel %vm91, 0.0, %v113
  %v118 = vpack.c.bf16 %v102, %v101
  %v119 = vpack.c.bf16 %v28, %v27
  %v120 = vpack.c.bf16 %v115, %v114
  %v121 = vpack.c.bf16 %v104, %v103
  %v122 = vpack.c.bf16 %v30, %v29
  %v123 = vpack.c.bf16 %v117, %v116
  %v124 = vld [vmem:[%s1] sm:$0xf]
  %v125 = vld [vmem:[%s1 + $0x4] sm:$0xf]
  %v126 = vld [vmem:[%s1 + $0x8] sm:$0xf]
  %v127 = vld [vmem:[%s1 + $0xc] sm:$0xf]
  %v128 = vld [vmem:[%s1 + $0x10] sm:$0xf]
  %v129 = vld [vmem:[%s1 + $0x14] sm:$0xf]
  %v130 = vld [vmem:[%s1 + $0x18] sm:$0xf]
  %v131 = vld [vmem:[%s1 + $0x1c] sm:$0xf]
  %v132 = vld [vmem:[%s1 + $0x20] sm:$0xf]
  %v133 = vld [vmem:[%s1 + $0x24] sm:$0xf]
  %v134 = vld [vmem:[%s1 + $0x28] sm:$0xf]
  %v135 = vld [vmem:[%s1 + $0x2c] sm:$0xf]
  %v136 = vld [vmem:[%s1 + $0x30] sm:$0xf]
  %v137 = vld [vmem:[%s1 + $0x34] sm:$0xf]
  %v138 = vld [vmem:[%s1 + $0x38] sm:$0xf]
  %v139 = vld [vmem:[%s1 + $0x3c] sm:$0xf]
  %v140 = vld [vmem:[%s1 + $0x40] sm:$0xf]
  %v141 = vld [vmem:[%s1 + $0x44] sm:$0xf]
  %v142 = vld [vmem:[%s1 + $0x48] sm:$0xf]
  %v143 = vld [vmem:[%s1 + $0x4c] sm:$0xf]
  %v144 = vld [vmem:[%s1 + $0x50] sm:$0xf]
  %v145 = vld [vmem:[%s1 + $0x54] sm:$0xf]
  %v146 = vld [vmem:[%s1 + $0x58] sm:$0xf]
  %v147 = vld [vmem:[%s1 + $0x5c] sm:$0xf]
  %v148 = vld [vmem:[%s1 + $0x60] sm:$0xf]
  %v149 = vld [vmem:[%s1 + $0x64] sm:$0xf]
  %v150 = vld [vmem:[%s1 + $0x68] sm:$0xf]
  %v151 = vld [vmem:[%s1 + $0x6c] sm:$0xf]
  %v152 = vld [vmem:[%s1 + $0x70] sm:$0xf]
  %v153 = vld [vmem:[%s1 + $0x74] sm:$0xf]
  %v154 = vld [vmem:[%s1 + $0x78] sm:$0xf]
  %v155 = vld [vmem:[%s1 + $0x7c] sm:$0xf]
  %v156 = vld [vmem:[%s1 + $0x80] sm:$0xf]
  %v157 = vld [vmem:[%s1 + $0x84] sm:$0xf]
  %v158 = vld [vmem:[%s1 + $0x88] sm:$0xf]
  %v159 = vld [vmem:[%s1 + $0x8c] sm:$0xf]
  %v160 = vld [vmem:[%s1 + $0x90] sm:$0xf]
  %v161 = vld [vmem:[%s1 + $0x94] sm:$0xf]
  %v162 = vld [vmem:[%s1 + $0x98] sm:$0xf]
  %v163 = vld [vmem:[%s1 + $0x9c] sm:$0xf]
  %v164 = vld [vmem:[%s1 + $0xa0] sm:$0xf]
  %v165 = vld [vmem:[%s1 + $0xa4] sm:$0xf]
  %v166 = vld [vmem:[%s1 + $0xa8] sm:$0xf]
  %v167 = vld [vmem:[%s1 + $0xac] sm:$0xf]
  %v168 = vld [vmem:[%s1 + $0xb0] sm:$0xf]
  %v169 = vld [vmem:[%s1 + $0xb4] sm:$0xf]
  %v170 = vld [vmem:[%s1 + $0xb8] sm:$0xf]
  %v171 = vld [vmem:[%s1 + $0xbc] sm:$0xf]
  %v220 = vunpack.c.l.b16 %v124
  %v221 = vunpack.c.l.b16 %v125
  %v222 = vunpack.c.l.b16 %v126
  %v223 = vunpack.c.l.b16 %v127
  %v224 = vunpack.c.l.b16 %v128
  %v225 = vunpack.c.l.b16 %v129
  %v226 = vunpack.c.l.b16 %v130
  %v227 = vunpack.c.l.b16 %v131
  %v228 = vunpack.c.l.b16 %v132
  %v229 = vunpack.c.l.b16 %v133
  %v230 = vunpack.c.l.b16 %v134
  %v231 = vunpack.c.l.b16 %v135
  %v232 = vunpack.c.l.b16 %v136
  %v233 = vunpack.c.l.b16 %v137
  %v234 = vunpack.c.l.b16 %v138
  %v235 = vunpack.c.l.b16 %v139
  %v236 = vunpack.c.l.b16 %v140
  %v237 = vunpack.c.l.b16 %v141
  %v238 = vunpack.c.l.b16 %v142
  %v239 = vunpack.c.l.b16 %v143
  %v240 = vunpack.c.l.b16 %v144
  %v241 = vunpack.c.l.b16 %v145
  %v242 = vunpack.c.l.b16 %v146
  %v243 = vunpack.c.l.b16 %v147
  %v244 = vunpack.c.l.b16 %v148
  %v245 = vunpack.c.l.b16 %v149
  %v246 = vunpack.c.l.b16 %v150
  %v247 = vunpack.c.l.b16 %v151
  %v248 = vunpack.c.l.b16 %v152
  %v249 = vunpack.c.l.b16 %v153
  %v250 = vunpack.c.l.b16 %v154
  %v251 = vunpack.c.l.b16 %v155
  %v252 = vunpack.c.l.b16 %v156
  %v253 = vunpack.c.l.b16 %v157
  %v254 = vunpack.c.l.b16 %v158
  %v255 = vunpack.c.l.b16 %v159
  %v256 = vunpack.c.l.b16 %v160
  %v257 = vunpack.c.l.b16 %v161
  %v258 = vunpack.c.l.b16 %v162
  %v259 = vunpack.c.l.b16 %v163
  %v260 = vunpack.c.l.b16 %v164
  %v261 = vunpack.c.l.b16 %v165
  %v262 = vunpack.c.l.b16 %v166
  %v263 = vunpack.c.l.b16 %v167
  %v264 = vunpack.c.l.b16 %v168
  %v265 = vunpack.c.l.b16 %v169
  %v266 = vunpack.c.l.b16 %v170
  %v267 = vunpack.c.l.b16 %v171
  %v268 = vpack.c.b16 %v221, %v220
  %v269 = vpack.c.b16 %v223, %v222
  %v270 = vpack.c.b16 %v225, %v224
  %v271 = vpack.c.b16 %v227, %v226
  %v272 = vpack.c.b16 %v229, %v228
  %v273 = vpack.c.b16 %v231, %v230
  %v274 = vpack.c.b16 %v233, %v232
  %v275 = vpack.c.b16 %v235, %v234
  %v276 = vpack.c.b16 %v237, %v236
  %v277 = vpack.c.b16 %v239, %v238
  %v278 = vpack.c.b16 %v241, %v240
  %v279 = vpack.c.b16 %v243, %v242
  %v280 = vpack.c.b16 %v245, %v244
  %v281 = vpack.c.b16 %v247, %v246
  %v282 = vpack.c.b16 %v249, %v248
  %v283 = vpack.c.b16 %v251, %v250
  %v284 = vpack.c.b16 %v253, %v252
  %v285 = vpack.c.b16 %v255, %v254
  %v286 = vpack.c.b16 %v257, %v256
  %v287 = vpack.c.b16 %v259, %v258
  %v288 = vpack.c.b16 %v261, %v260
  %v289 = vpack.c.b16 %v263, %v262
  %v290 = vpack.c.b16 %v265, %v264
  %v291 = vpack.c.b16 %v267, %v266
  %316 = vmatprep.subr.bf16.mxu0 0
  %317 = vmatpush1.bf16.msra.mxu0 %v268
  %318 = vmatprep.subr.bf16.mxu0 0
  %319 = vmatpush1.bf16.msra.mxu0 %v269
  %320 = vmatprep.subr.bf16.mxu0 0
  %321 = vmatpush1.bf16.msra.mxu0 %v270
  %322 = vmatprep.subr.bf16.mxu0 0
  %323 = vmatpush1.bf16.msra.mxu0 %v271
  %324 = vmatprep.subr.bf16.mxu0 0
  %325 = vmatpush1.bf16.msra.mxu0 %v272
  %326 = vmatprep.subr.bf16.mxu0 0
  %327 = vmatpush1.bf16.msra.mxu0 %v273
  %328 = vmatprep.subr.bf16.mxu0 0
  %329 = vmatpush1.bf16.msra.mxu0 %v274
  %330 = vmatprep.subr.bf16.mxu0 0
  %331 = vmatpush1.bf16.msra.mxu0 %v275
  %332 = vmatprep.subr.bf16.mxu0 0
  %333 = vmatpush1.bf16.msra.mxu0 %v276
  %334 = vmatprep.subr.bf16.mxu0 0
  %335 = vmatpush1.bf16.msra.mxu0 %v277
  %336 = vmatprep.subr.bf16.mxu0 0
  %337 = vmatpush1.bf16.msra.mxu0 %v278
  %338 = vmatprep.subr.bf16.mxu0 0
  %339 = vmatpush1.bf16.msra.mxu0 %v279
  %340 = vmatprep.subr.bf16.mxu0 0
  %341 = vmatpush1.bf16.msra.mxu0 %v280
  %342 = vmatprep.subr.bf16.mxu0 0
  %343 = vmatpush1.bf16.msra.mxu0 %v281
  %344 = vmatprep.subr.bf16.mxu0 0
  %345 = vmatpush1.bf16.msra.mxu0 %v282
  %346 = vmatprep.subr.bf16.mxu0 0
  %347 = vmatpush1.bf16.msra.mxu0 %v283
  %348 = vmatprep.mubr.bf16.mxu0 %v119
  %349 = vmatmul.mubr.bf16.gmra.mrb[0].mxu0 %v118
  %v350 = vpop.f32.mrb[0].mxu0
  %v351 = vadd.f32 0.0, %v350
  %v352 = vpop.f32.mrb[0].mxu0
  %v353 = vpop.f32.mrb[0].mxu0
  %v354 = vadd.f32 0.0, %v353
  %v355 = vpop.f32.mrb[0].mxu0
  %356 = vmatprep.mubr.bf16.mxu0 %v122
  %357 = vmatmul.mubr.bf16.gmra.mrb[0].mxu0 %v121
  %v358 = vpop.f32.mrb[0].mxu0
  %v359 = vadd.f32 0.0, %v358
  %v360 = vpop.f32.mrb[0].mxu0
  %v361 = vpop.f32.mrb[0].mxu0
  %v362 = vadd.f32 0.0, %v361
  %v363 = vpop.f32.mrb[0].mxu0
  %364 = vdwg.mxu0
  %365 = vmatprep.subr.bf16.mxu0 0
  %366 = vmatpush1.bf16.msra.mxu0 %v284
  %367 = vmatprep.subr.bf16.mxu0 0
  %368 = vmatpush1.bf16.msra.mxu0 %v285
  %369 = vmatprep.subr.bf16.mxu0 0
  %370 = vmatpush1.bf16.msra.mxu0 %v286
  %371 = vmatprep.subr.bf16.mxu0 0
  %372 = vmatpush1.bf16.msra.mxu0 %v287
  %373 = vmatprep.subr.bf16.mxu0 0
  %374 = vmatpush1.bf16.msra.mxu0 %v288
  %375 = vmatprep.subr.bf16.mxu0 0
  %376 = vmatpush1.bf16.msra.mxu0 %v289
  %377 = vmatprep.subr.bf16.mxu0 0
  %378 = vmatpush1.bf16.msra.mxu0 %v290
  %379 = vmatprep.subr.bf16.mxu0 0
  %380 = vmatpush1.bf16.msra.mxu0 %v291
  %381 = vmatprep.subr.bf16.mxu0 0
  %382 = vmatpush1.bf16.msra.mxu0 0
  %383 = vmatprep.subr.bf16.mxu0 0
  %384 = vmatpush1.bf16.msra.mxu0 0
  %385 = vmatprep.subr.bf16.mxu0 0
  %386 = vmatpush1.bf16.msra.mxu0 0
  %387 = vmatprep.subr.bf16.mxu0 0
  %388 = vmatpush1.bf16.msra.mxu0 0
  %389 = vmatprep.subr.bf16.mxu0 0
  %390 = vmatpush1.bf16.msra.mxu0 0
  %391 = vmatprep.subr.bf16.mxu0 0
  %392 = vmatpush1.bf16.msra.mxu0 0
  %393 = vmatprep.subr.bf16.mxu0 0
  %394 = vmatpush1.bf16.msra.mxu0 0
  %395 = vmatprep.subr.bf16.mxu0 0
  %396 = vmatpush1.bf16.msra.mxu0 0
  %397 = vmatprep.mubr.bf16.mxu0 0
  %398 = vmatmul.mubr.bf16.gmra.mrb[0].mxu0 %v120
  %v399 = vpop.f32.mrb[0].mxu0
  %v400 = vadd.f32 %v351, %v399
  %v401 = vpop.f32.mrb[0].mxu0
  %v402 = vpop.f32.mrb[0].mxu0
  %v403 = vadd.f32 %v354, %v402
  %v404 = vpop.f32.mrb[0].mxu0
  %405 = vmatprep.mubr.bf16.mxu0 0
  %406 = vmatmul.mubr.bf16.gmra.mrb[0].mxu0 %v123
  %v407 = vpop.f32.mrb[0].mxu0
  %v408 = vadd.f32 %v359, %v407
  %v409 = vpop.f32.mrb[0].mxu0
  %v410 = vpop.f32.mrb[0].mxu0
  %v411 = vadd.f32 %v362, %v410
  %v412 = vpop.f32.mrb[0].mxu0
  %413 = vdwg.mxu0
  %v414 = vld [vmem:[%s3] sm:$0x1]
  %v415 = vld [vmem:[%s4] sm:$0x1]
  %v416 = vadd.f32 %v400, %v403
  %v417 = vadd.f32 %v416, %v408
  %v418 = vadd.f32 %v417, %v411
  %v419 = vrot.slane %v418, 4
  %v420 = vadd.f32 %v418, %v419
  %v421 = vrot.slane %v420, 2
  %v422 = vadd.f32 %v420, %v421
  %v423 = vrot.slane %v422, 1
  %v424 = vadd.f32 %v422, %v423
  %425 = vrot.lane.b32.xlu0 %v424, 64
  %v426 = vpop.permute.xlu0 %425
  %v427 = vadd.f32 %v424, %v426
  %428 = vrot.lane.b32.xlu0 %v427, 32
  %v429 = vpop.permute.xlu0 %428
  %v430 = vadd.f32 %v427, %v429
  %431 = vrot.lane.b32.xlu0 %v430, 16
  %v432 = vpop.permute.xlu0 %431
  %v433 = vadd.f32 %v430, %v432
  %434 = vrot.lane.b32.xlu0 %v433, 8
  %v435 = vpop.permute.xlu0 %434
  %v436 = vadd.f32 %v433, %v435
  %v437 = vmul.f32 %v436, 0.001953125
  %v438 = vlaneseq
  %v439 = vshrl.u32 %v438, 7
  %v440 = vsub.s32 0, %v439
  %v441 = vrot.slane %v437, %v440
  %v442 = vsub.f32 %v400, %v441
  %v443 = vsub.f32 %v403, %v441
  %v444 = vsub.f32 %v408, %v441
  %v445 = vsub.f32 %v411, %v441
  %v446 = vmul.f32 %v442, %v442
  %v447 = vmul.f32 %v443, %v443
  %v448 = vmul.f32 %v444, %v444
  %v449 = vmul.f32 %v445, %v445
  %v450 = vadd.f32 %v446, %v447
  %v451 = vadd.f32 %v450, %v448
  %v452 = vadd.f32 %v451, %v449
  %v453 = vrot.slane %v452, 4
  %v454 = vadd.f32 %v452, %v453
  %v455 = vrot.slane %v454, 2
  %v456 = vadd.f32 %v454, %v455
  %v457 = vrot.slane %v456, 1
  %v458 = vadd.f32 %v456, %v457
  %459 = vrot.lane.b32.xlu0 %v458, 64
  %v460 = vpop.permute.xlu0 %459
  %v461 = vadd.f32 %v458, %v460
  %462 = vrot.lane.b32.xlu0 %v461, 32
  %v463 = vpop.permute.xlu0 %462
  %v464 = vadd.f32 %v461, %v463
  %465 = vrot.lane.b32.xlu0 %v464, 16
  %v466 = vpop.permute.xlu0 %465
  %v467 = vadd.f32 %v464, %v466
  %468 = vrot.lane.b32.xlu0 %v467, 8
  %v469 = vpop.permute.xlu0 %468
  %v470 = vadd.f32 %v467, %v469
  %v471 = vmul.f32 %v470, 0.001953125
  %v472 = vadd.f32 %v471, 1e-05
  %v473 = vrsqrt.pop %v472
  %v474 = vmul.f32 %v414, %v473
  %v476 = vlaneseq
  %v477 = vshrl.u32 %v476, 7
  %v478 = vsub.s32 0, %v477
  %v479 = vrot.slane %v474, %v478
  %v481 = vmul.f32 %v442, %v479
  %v482 = vmul.f32 %v443, %v479
  %v483 = vmul.f32 %v444, %v479
  %v484 = vmul.f32 %v445, %v479
  %v486 = vlaneseq
  %v487 = vshrl.u32 %v486, 7
  %v488 = vsub.s32 0, %v487
  %v489 = vrot.slane %v415, %v488
  %v491 = vadd.f32 %v481, %v489
  %v492 = vadd.f32 %v482, %v489
  %v493 = vadd.f32 %v483, %v489
  %v494 = vadd.f32 %v484, %v489
  %v495 = vmax.f32 %v491, 0.0
  %v496 = vmax.f32 %v492, 0.0
  %v497 = vmax.f32 %v493, 0.0
  %v498 = vmax.f32 %v494, 0.0
  %v499 = vrot.slane %v495, 7
  %v500 = vrot.slane %v496, 7
  %v501 = vrot.slane %v497, 7
  %v502 = vrot.slane %v498, 7
  %v503 = vsel %vm96, %v501, %v502
  %v504 = vsel %vm96, %v500, %v501
  %v505 = vsel %vm96, %v499, %v500
  %v506 = vsel %vm96, %v502, %v499
  %v507 = vsel %vm84, 0.0, %v506
  %v508 = vsel %vm85, 0.0, %v505
  %v509 = vsel %vm86, 0.0, %v504
  %v510 = vsel %vm87, 0.0, %v503
  %v511 = vrot.slane %v495, 1
  %v512 = vrot.slane %v496, 1
  %v513 = vrot.slane %v497, 1
  %v514 = vrot.slane %v498, 1
  %v515 = vsel %vm109, %v513, %v514
  %v516 = vsel %vm109, %v512, %v513
  %v517 = vsel %vm109, %v511, %v512
  %v518 = vsel %vm109, %v514, %v511
  %v519 = vsel %vm88, 0.0, %v517
  %v520 = vsel %vm89, 0.0, %v516
  %v521 = vsel %vm90, 0.0, %v515
  %v522 = vsel %vm91, 0.0, %v518
  %v523 = vpack.c.bf16 %v508, %v507
  %v524 = vpack.c.bf16 %v496, %v495
  %v525 = vpack.c.bf16 %v520, %v519
  %v526 = vpack.c.bf16 %v510, %v509
  %v527 = vpack.c.bf16 %v498, %v497
  %v528 = vpack.c.bf16 %v522, %v521
  %v529 = vld [vmem:[%s2] sm:$0xf]
  %v530 = vld [vmem:[%s2 + $0x4] sm:$0xf]
  %v531 = vld [vmem:[%s2 + $0x8] sm:$0xf]
  %v532 = vld [vmem:[%s2 + $0xc] sm:$0xf]
  %v533 = vld [vmem:[%s2 + $0x10] sm:$0xf]
  %v534 = vld [vmem:[%s2 + $0x14] sm:$0xf]
  %v535 = vld [vmem:[%s2 + $0x18] sm:$0xf]
  %v536 = vld [vmem:[%s2 + $0x1c] sm:$0xf]
  %v537 = vld [vmem:[%s2 + $0x20] sm:$0xf]
  %v538 = vld [vmem:[%s2 + $0x24] sm:$0xf]
  %v539 = vld [vmem:[%s2 + $0x28] sm:$0xf]
  %v540 = vld [vmem:[%s2 + $0x2c] sm:$0xf]
  %v541 = vld [vmem:[%s2 + $0x30] sm:$0xf]
  %v542 = vld [vmem:[%s2 + $0x34] sm:$0xf]
  %v543 = vld [vmem:[%s2 + $0x38] sm:$0xf]
  %v544 = vld [vmem:[%s2 + $0x3c] sm:$0xf]
  %v545 = vld [vmem:[%s2 + $0x40] sm:$0xf]
  %v546 = vld [vmem:[%s2 + $0x44] sm:$0xf]
  %v547 = vld [vmem:[%s2 + $0x48] sm:$0xf]
  %v548 = vld [vmem:[%s2 + $0x4c] sm:$0xf]
  %v549 = vld [vmem:[%s2 + $0x50] sm:$0xf]
  %v550 = vld [vmem:[%s2 + $0x54] sm:$0xf]
  %v551 = vld [vmem:[%s2 + $0x58] sm:$0xf]
  %v552 = vld [vmem:[%s2 + $0x5c] sm:$0xf]
  %v553 = vld [vmem:[%s2 + $0x60] sm:$0xf]
  %v554 = vld [vmem:[%s2 + $0x64] sm:$0xf]
  %v555 = vld [vmem:[%s2 + $0x68] sm:$0xf]
  %v556 = vld [vmem:[%s2 + $0x6c] sm:$0xf]
  %v557 = vld [vmem:[%s2 + $0x70] sm:$0xf]
  %v558 = vld [vmem:[%s2 + $0x74] sm:$0xf]
  %v559 = vld [vmem:[%s2 + $0x78] sm:$0xf]
  %v560 = vld [vmem:[%s2 + $0x7c] sm:$0xf]
  %v561 = vld [vmem:[%s2 + $0x80] sm:$0xf]
  %v562 = vld [vmem:[%s2 + $0x84] sm:$0xf]
  %v563 = vld [vmem:[%s2 + $0x88] sm:$0xf]
  %v564 = vld [vmem:[%s2 + $0x8c] sm:$0xf]
  %v565 = vld [vmem:[%s2 + $0x90] sm:$0xf]
  %v566 = vld [vmem:[%s2 + $0x94] sm:$0xf]
  %v567 = vld [vmem:[%s2 + $0x98] sm:$0xf]
  %v568 = vld [vmem:[%s2 + $0x9c] sm:$0xf]
  %v569 = vld [vmem:[%s2 + $0xa0] sm:$0xf]
  %v570 = vld [vmem:[%s2 + $0xa4] sm:$0xf]
  %v571 = vld [vmem:[%s2 + $0xa8] sm:$0xf]
  %v572 = vld [vmem:[%s2 + $0xac] sm:$0xf]
  %v573 = vld [vmem:[%s2 + $0xb0] sm:$0xf]
  %v574 = vld [vmem:[%s2 + $0xb4] sm:$0xf]
  %v575 = vld [vmem:[%s2 + $0xb8] sm:$0xf]
  %v576 = vld [vmem:[%s2 + $0xbc] sm:$0xf]
  %v625 = vunpack.c.l.b16 %v529
  %v626 = vunpack.c.l.b16 %v530
  %v627 = vunpack.c.l.b16 %v531
  %v628 = vunpack.c.l.b16 %v532
  %v629 = vunpack.c.l.b16 %v533
  %v630 = vunpack.c.l.b16 %v534
  %v631 = vunpack.c.l.b16 %v535
  %v632 = vunpack.c.l.b16 %v536
  %v633 = vunpack.c.l.b16 %v537
  %v634 = vunpack.c.l.b16 %v538
  %v635 = vunpack.c.l.b16 %v539
  %v636 = vunpack.c.l.b16 %v540
  %v637 = vunpack.c.l.b16 %v541
  %v638 = vunpack.c.l.b16 %v542
  %v639 = vunpack.c.l.b16 %v543
  %v640 = vunpack.c.l.b16 %v544
  %v641 = vunpack.c.l.b16 %v545
  %v642 = vunpack.c.l.b16 %v546
  %v643 = vunpack.c.l.b16 %v547
  %v644 = vunpack.c.l.b16 %v548
  %v645 = vunpack.c.l.b16 %v549
  %v646 = vunpack.c.l.b16 %v550
  %v647 = vunpack.c.l.b16 %v551
  %v648 = vunpack.c.l.b16 %v552
  %v649 = vunpack.c.l.b16 %v553
  %v650 = vunpack.c.l.b16 %v554
  %v651 = vunpack.c.l.b16 %v555
  %v652 = vunpack.c.l.b16 %v556
  %v653 = vunpack.c.l.b16 %v557
  %v654 = vunpack.c.l.b16 %v558
  %v655 = vunpack.c.l.b16 %v559
  %v656 = vunpack.c.l.b16 %v560
  %v657 = vunpack.c.l.b16 %v561
  %v658 = vunpack.c.l.b16 %v562
  %v659 = vunpack.c.l.b16 %v563
  %v660 = vunpack.c.l.b16 %v564
  %v661 = vunpack.c.l.b16 %v565
  %v662 = vunpack.c.l.b16 %v566
  %v663 = vunpack.c.l.b16 %v567
  %v664 = vunpack.c.l.b16 %v568
  %v665 = vunpack.c.l.b16 %v569
  %v666 = vunpack.c.l.b16 %v570
  %v667 = vunpack.c.l.b16 %v571
  %v668 = vunpack.c.l.b16 %v572
  %v669 = vunpack.c.l.b16 %v573
  %v670 = vunpack.c.l.b16 %v574
  %v671 = vunpack.c.l.b16 %v575
  %v672 = vunpack.c.l.b16 %v576
  %v673 = vpack.c.b16 %v626, %v625
  %v674 = vpack.c.b16 %v628, %v627
  %v675 = vpack.c.b16 %v630, %v629
  %v676 = vpack.c.b16 %v632, %v631
  %v677 = vpack.c.b16 %v634, %v633
  %v678 = vpack.c.b16 %v636, %v635
  %v679 = vpack.c.b16 %v638, %v637
  %v680 = vpack.c.b16 %v640, %v639
  %v681 = vpack.c.b16 %v642, %v641
  %v682 = vpack.c.b16 %v644, %v643
  %v683 = vpack.c.b16 %v646, %v645
  %v684 = vpack.c.b16 %v648, %v647
  %v685 = vpack.c.b16 %v650, %v649
  %v686 = vpack.c.b16 %v652, %v651
  %v687 = vpack.c.b16 %v654, %v653
  %v688 = vpack.c.b16 %v656, %v655
  %v689 = vpack.c.b16 %v658, %v657
  %v690 = vpack.c.b16 %v660, %v659
  %v691 = vpack.c.b16 %v662, %v661
  %v692 = vpack.c.b16 %v664, %v663
  %v693 = vpack.c.b16 %v666, %v665
  %v694 = vpack.c.b16 %v668, %v667
  %v695 = vpack.c.b16 %v670, %v669
  %v696 = vpack.c.b16 %v672, %v671
  %721 = vmatprep.subr.bf16.mxu0 0
  %722 = vmatpush1.bf16.msra.mxu0 %v673
  %723 = vmatprep.subr.bf16.mxu0 0
  %724 = vmatpush1.bf16.msra.mxu0 %v674
  %725 = vmatprep.subr.bf16.mxu0 0
  %726 = vmatpush1.bf16.msra.mxu0 %v675
  %727 = vmatprep.subr.bf16.mxu0 0
  %728 = vmatpush1.bf16.msra.mxu0 %v676
  %729 = vmatprep.subr.bf16.mxu0 0
  %730 = vmatpush1.bf16.msra.mxu0 %v677
  %731 = vmatprep.subr.bf16.mxu0 0
  %732 = vmatpush1.bf16.msra.mxu0 %v678
  %733 = vmatprep.subr.bf16.mxu0 0
  %734 = vmatpush1.bf16.msra.mxu0 %v679
  %735 = vmatprep.subr.bf16.mxu0 0
  %736 = vmatpush1.bf16.msra.mxu0 %v680
  %737 = vmatprep.subr.bf16.mxu0 0
  %738 = vmatpush1.bf16.msra.mxu0 %v681
  %739 = vmatprep.subr.bf16.mxu0 0
  %740 = vmatpush1.bf16.msra.mxu0 %v682
  %741 = vmatprep.subr.bf16.mxu0 0
  %742 = vmatpush1.bf16.msra.mxu0 %v683
  %743 = vmatprep.subr.bf16.mxu0 0
  %744 = vmatpush1.bf16.msra.mxu0 %v684
  %745 = vmatprep.subr.bf16.mxu0 0
  %746 = vmatpush1.bf16.msra.mxu0 %v685
  %747 = vmatprep.subr.bf16.mxu0 0
  %748 = vmatpush1.bf16.msra.mxu0 %v686
  %749 = vmatprep.subr.bf16.mxu0 0
  %750 = vmatpush1.bf16.msra.mxu0 %v687
  %751 = vmatprep.subr.bf16.mxu0 0
  %752 = vmatpush1.bf16.msra.mxu0 %v688
  %753 = vmatprep.mubr.bf16.mxu0 %v524
  %754 = vmatmul.mubr.bf16.gmra.mrb[0].mxu0 %v523
  %v755 = vpop.f32.mrb[0].mxu0
  %v756 = vadd.f32 0.0, %v755
  %v757 = vpop.f32.mrb[0].mxu0
  %v758 = vpop.f32.mrb[0].mxu0
  %v759 = vadd.f32 0.0, %v758
  %v760 = vpop.f32.mrb[0].mxu0
  %761 = vmatprep.mubr.bf16.mxu0 %v527
  %762 = vmatmul.mubr.bf16.gmra.mrb[0].mxu0 %v526
  %v763 = vpop.f32.mrb[0].mxu0
  %v764 = vadd.f32 0.0, %v763
  %v765 = vpop.f32.mrb[0].mxu0
  %v766 = vpop.f32.mrb[0].mxu0
  %v767 = vadd.f32 0.0, %v766
  %v768 = vpop.f32.mrb[0].mxu0
  %769 = vdwg.mxu0
  %770 = vmatprep.subr.bf16.mxu0 0
  %771 = vmatpush1.bf16.msra.mxu0 %v689
  %772 = vmatprep.subr.bf16.mxu0 0
  %773 = vmatpush1.bf16.msra.mxu0 %v690
  %774 = vmatprep.subr.bf16.mxu0 0
  %775 = vmatpush1.bf16.msra.mxu0 %v691
  %776 = vmatprep.subr.bf16.mxu0 0
  %777 = vmatpush1.bf16.msra.mxu0 %v692
  %778 = vmatprep.subr.bf16.mxu0 0
  %779 = vmatpush1.bf16.msra.mxu0 %v693
  %780 = vmatprep.subr.bf16.mxu0 0
  %781 = vmatpush1.bf16.msra.mxu0 %v694
  %782 = vmatprep.subr.bf16.mxu0 0
  %783 = vmatpush1.bf16.msra.mxu0 %v695
  %784 = vmatprep.subr.bf16.mxu0 0
  %785 = vmatpush1.bf16.msra.mxu0 %v696
  %786 = vmatprep.subr.bf16.mxu0 0
  %787 = vmatpush1.bf16.msra.mxu0 0
  %788 = vmatprep.subr.bf16.mxu0 0
  %789 = vmatpush1.bf16.msra.mxu0 0
  %790 = vmatprep.subr.bf16.mxu0 0
  %791 = vmatpush1.bf16.msra.mxu0 0
  %792 = vmatprep.subr.bf16.mxu0 0
  %793 = vmatpush1.bf16.msra.mxu0 0
  %794 = vmatprep.subr.bf16.mxu0 0
  %795 = vmatpush1.bf16.msra.mxu0 0
  %796 = vmatprep.subr.bf16.mxu0 0
  %797 = vmatpush1.bf16.msra.mxu0 0
  %798 = vmatprep.subr.bf16.mxu0 0
  %799 = vmatpush1.bf16.msra.mxu0 0
  %800 = vmatprep.subr.bf16.mxu0 0
  %801 = vmatpush1.bf16.msra.mxu0 0
  %802 = vmatprep.mubr.bf16.mxu0 0
  %803 = vmatmul.mubr.bf16.gmra.mrb[0].mxu0 %v525
  %v804 = vpop.f32.mrb[0].mxu0
  %v805 = vadd.f32 %v756, %v804
  %v806 = vpop.f32.mrb[0].mxu0
  %v807 = vpop.f32.mrb[0].mxu0
  %v808 = vadd.f32 %v759, %v807
  %v809 = vpop.f32.mrb[0].mxu0
  %810 = vmatprep.mubr.bf16.mxu0 0
  %811 = vmatmul.mubr.bf16.gmra.mrb[0].mxu0 %v528
  %v812 = vpop.f32.mrb[0].mxu0
  %v813 = vadd.f32 %v764, %v812
  %v814 = vpop.f32.mrb[0].mxu0
  %v815 = vpop.f32.mrb[0].mxu0
  %v816 = vadd.f32 %v767, %v815
  %v817 = vpop.f32.mrb[0].mxu0
  %818 = vdwg.mxu0
  %v819 = vld [vmem:[%s5] sm:$0x1]
  %v820 = vld [vmem:[%s6] sm:$0x1]
  %v821 = vadd.f32 %v805, %v808
  %v822 = vadd.f32 %v821, %v813
  %v823 = vadd.f32 %v822, %v816
  %v824 = vrot.slane %v823, 4
  %v825 = vadd.f32 %v823, %v824
  %v826 = vrot.slane %v825, 2
  %v827 = vadd.f32 %v825, %v826
  %v828 = vrot.slane %v827, 1
  %v829 = vadd.f32 %v827, %v828
  %830 = vrot.lane.b32.xlu0 %v829, 64
  %v831 = vpop.permute.xlu0 %830
  %v832 = vadd.f32 %v829, %v831
  %833 = vrot.lane.b32.xlu0 %v832, 32
  %v834 = vpop.permute.xlu0 %833
  %v835 = vadd.f32 %v832, %v834
  %836 = vrot.lane.b32.xlu0 %v835, 16
  %v837 = vpop.permute.xlu0 %836
  %v838 = vadd.f32 %v835, %v837
  %839 = vrot.lane.b32.xlu0 %v838, 8
  %v840 = vpop.permute.xlu0 %839
  %v841 = vadd.f32 %v838, %v840
  %v842 = vmul.f32 %v841, 0.001953125
  %v843 = vlaneseq
  %v844 = vshrl.u32 %v843, 7
  %v845 = vsub.s32 0, %v844
  %v846 = vrot.slane %v842, %v845
  %v847 = vsub.f32 %v805, %v846
  %v848 = vsub.f32 %v808, %v846
  %v849 = vsub.f32 %v813, %v846
  %v850 = vsub.f32 %v816, %v846
  %v851 = vmul.f32 %v847, %v847
  %v852 = vmul.f32 %v848, %v848
  %v853 = vmul.f32 %v849, %v849
  %v854 = vmul.f32 %v850, %v850
  %v855 = vadd.f32 %v851, %v852
  %v856 = vadd.f32 %v855, %v853
  %v857 = vadd.f32 %v856, %v854
  %v858 = vrot.slane %v857, 4
  %v859 = vadd.f32 %v857, %v858
  %v860 = vrot.slane %v859, 2
  %v861 = vadd.f32 %v859, %v860
  %v862 = vrot.slane %v861, 1
  %v863 = vadd.f32 %v861, %v862
  %864 = vrot.lane.b32.xlu0 %v863, 64
  %v865 = vpop.permute.xlu0 %864
  %v866 = vadd.f32 %v863, %v865
  %867 = vrot.lane.b32.xlu0 %v866, 32
  %v868 = vpop.permute.xlu0 %867
  %v869 = vadd.f32 %v866, %v868
  %870 = vrot.lane.b32.xlu0 %v869, 16
  %v871 = vpop.permute.xlu0 %870
  %v872 = vadd.f32 %v869, %v871
  %873 = vrot.lane.b32.xlu0 %v872, 8
  %v874 = vpop.permute.xlu0 %873
  %v875 = vadd.f32 %v872, %v874
  %v876 = vmul.f32 %v875, 0.001953125
  %v877 = vadd.f32 %v876, 1e-05
  %v878 = vrsqrt.pop %v877
  %v879 = vmul.f32 %v819, %v878
  %v881 = vlaneseq
  %v882 = vshrl.u32 %v881, 7
  %v883 = vsub.s32 0, %v882
  %v884 = vrot.slane %v879, %v883
  %v886 = vmul.f32 %v847, %v884
  %v887 = vmul.f32 %v848, %v884
  %v888 = vmul.f32 %v849, %v884
  %v889 = vmul.f32 %v850, %v884
  %v891 = vlaneseq
  %v892 = vshrl.u32 %v891, 7
  %v893 = vsub.s32 0, %v892
  %v894 = vrot.slane %v820, %v893
  %v896 = vadd.f32 %v886, %v894
  %v897 = vadd.f32 %v887, %v894
  %v898 = vadd.f32 %v888, %v894
  %v899 = vadd.f32 %v889, %v894
  %v900 = vadd.f32 %v896, %v27
  %v901 = vadd.f32 %v897, %v28
  %v902 = vadd.f32 %v898, %v29
  %v903 = vadd.f32 %v899, %v30
  %v904 = vmax.f32 %v900, 0.0
  %v905 = vmax.f32 %v901, 0.0
  %v906 = vmax.f32 %v902, 0.0
  %v907 = vmax.f32 %v903, 0.0
  %908 = vst [vmem:[%s7] sm:$0xff] %v904
  %909 = vst [vmem:[%s7 + $0x8] sm:$0xff] %v905
  %910 = vst [vmem:[%s7 + $0x10] sm:$0xff] %v906
  %911 = vst [vmem:[%s7 + $0x18] sm:$0xff] %v907
  // Predicated region
  $region30: #{basic_block_forward_nhwc.1} parent=0 // pred_check
    _
  $region31: #{basic_block_forward_nhwc.1} parent=0 // pred_check_branch
    %913 = sbr.rel (0) target = $region33
  $region32: #{basic_block_forward_nhwc.1} parent=0 // pred_region
    _
  $region33: #{basic_block_forward_nhwc.1} parent=0 // pred_fallthru
    _
  // Predicated region
  $region34: #{basic_block_forward_nhwc.1} parent=0 // pred_check
    _
  $region35: #{basic_block_forward_nhwc.1} parent=0 // pred_check_branch
    %915 = sbr.rel (0) target = $region37
  $region36: #{basic_block_forward_nhwc.1} parent=0 // pred_region
    _
  $region37: #{basic_block_forward_nhwc.1} parent=0 // pred_fallthru
    _

</llo_original>
